<compile_context>
chip_gen: v5e
topology: v5e:2x2
jax: 0.10.0
libtpu: 0.0.40
codegen_flags: <defaults>
</compile_context>

<pallas_src>
import jax
import jax.numpy as jnp
import numpy as np
from jax.experimental import pallas as pl
from jax.experimental.pallas import tpu as pltpu


def _cfg_denoiser_kernel(wx_ref, bx_ref, x_ref, so_ref, o_ref, acc_ref):
    """Fused inner model + CFG combine, single step over the whole batch.

    wx_ref : SMEM f32[C*C]        row-major, wx_ref[i*C + o] = Wx[i, o]
    bx_ref : SMEM f32[C]
    x_ref  : VMEM f32[B*C, HW]    lane-dense, (8,128)-aligned slab
    so_ref : VMEM f32[B*C, 2]     col 0 = per-row sigma, col 1 = CFG offset
    o_ref  : VMEM f32[B*C, HW]
    acc_ref: VMEM f32[B*C, HW]    scratch for the channel-mix result
    """
    bc_rows, _ = x_ref.shape
    c = bx_ref.shape[0]
    b = bc_rows // c

    x = x_ref[...]                                        # one dense [B*C, HW] load

    # 1x1 conv over channels, fully unrolled (C is tiny -- far too small for the
    # MXU): SMEM scalars multiply full [1, HW] rows on the VPU.
    # TODO(synk): for real channel counts (C >= ~64) replace this loop with an
    # MXU matmul [HW_tile, C_in] @ [C_in, C_out] with preferred_element_type=f32.
    for bi in range(b):
        base = bi * c
        for o in range(c):
            row = x[base:base + 1, :] * wx_ref[o]          # i = 0 term
            for i in range(1, c):
                row = row + x[base + i:base + i + 1, :] * wx_ref[i * c + o]
            acc_ref[pl.ds(base + o, 1), :] = row + bx_ref[o]

    # Dense epilogue on the full (8,128)-aligned slab: tanh on the EUP, per-row
    # sigma scale and pre-folded CFG offset, one unmasked lane-dense store.
    sig = so_ref[:, 0:1]                                   # [B*C, 1]
    off = so_ref[:, 1:2]                                   # [B*C, 1]
    o_ref[...] = (jnp.tanh(acc_ref[...]) * sig + off).astype(o_ref.dtype)


def cfg_denoiser_forward(x, sigma, uncond, cond, cond_scale, params):
    """Pallas implementation of CFGDenoiser.forward.

    x      : f32[B, C, H, W]   (NCHW, as in PyTorch)
    sigma  : f32[B]
    uncond : f32[B, D]
    cond   : f32[B, D]
    cond_scale : scalar (runtime)
    returns f32[B, C, H, W]
    """
    B, C, H, W = x.shape
    HW = H * W
    BC = B * C

    wx, bx, wc, bc = params["wx"], params["bx"], params["wc"], params["bc"]

    # Flatten spatial onto the lane axis and fold (B, C) onto the sublane axis:
    # the kernel sees an (8, 256) dense slab at the toy sizes (free reshape).
    x_k = x.reshape(BC, HW).astype(jnp.float32)

    # CFG combine pre-folded into the affine conditioning projection (exact):
    #   u + (c - u)*g  with  u = uncond@Wc+bc, c = cond@Wc+bc
    #   = (uncond + (cond - uncond)*g) @ Wc + bc
    # The doubled batch of the PyTorch module is never materialized: the
    # x/sigma-dependent term is identical for both CFG halves.
    g = jnp.asarray(cond_scale, dtype=jnp.float32)
    cond_mix = uncond + (cond - uncond) * g
    off_col = (cond_mix @ wc + bc).reshape(BC, 1)                    # [B*C, 1]
    sig_col = jnp.repeat(sigma, C).reshape(BC, 1)                    # [B*C, 1]
    so = jnp.concatenate([sig_col, off_col], axis=1).astype(jnp.float32)  # [B*C, 2]

    wx_flat = wx.reshape(C * C).astype(jnp.float32)    # wx_flat[i*C + o] = Wx[i, o]
    bx_flat = bx.reshape(C).astype(jnp.float32)

    smem = pl.BlockSpec(memory_space=pltpu.MemorySpace.SMEM)
    vmem = pl.BlockSpec(memory_space=pltpu.MemorySpace.VMEM)

    cost = pl.CostEstimate(
        flops=BC * HW * (2 * C + 3),
        transcendentals=BC * HW,
        bytes_accessed=4 * (2 * BC * HW + BC * 2 + C * C + C),
    )

    out = pl.pallas_call(
        _cfg_denoiser_kernel,
        out_shape=jax.ShapeDtypeStruct((BC, HW), jnp.float32),
        in_specs=[smem, smem, vmem, vmem],
        out_specs=vmem,
        scratch_shapes=[pltpu.VMEM((BC, HW), jnp.float32)],
        cost_estimate=cost,
        # TODO(synk): at production diffusion sizes (C~320, HW~4096) tile the HW
        # (lane) axis against v7x's 64 MiB VMEM and use bf16 I/O on v6e/v7x.
    )(wx_flat, bx_flat, x_k, so)

    return out.reshape(B, C, H, W)


# ----------------------- pure-JAX reference (for checking) -------------------
def _inner_model_ref(x_nchw, sigma, cond_emb, params):
    wx, bx, wc, bc = params["wx"], params["bx"], params["wc"], params["bc"]
    h = jnp.einsum("nchw,co->nohw", x_nchw, wx) + bx.reshape(1, -1, 1, 1)
    c = cond_emb @ wc + bc                                           # [N, C]
    return jnp.tanh(h) * sigma[:, None, None, None] + c[:, :, None, None]


def cfg_denoiser_ref(x, sigma, uncond, cond, cond_scale, params):
    B = x.shape[0]
    x_in = jnp.concatenate([x, x], axis=0)
    sigma_in = jnp.concatenate([sigma, sigma], axis=0)
    cond_in = jnp.concatenate([uncond, cond], axis=0)
    den = _inner_model_ref(x_in, sigma_in, cond_in, params)
    u, c = den[:B], den[B:]
    return u + (c - u) * cond_scale


if __name__ == "__main__":
    B, C, H, W, D = 2, 4, 16, 16, 8
    cond_scale = 7.5

    key = jax.random.PRNGKey(0)
    kx, ks, ku, kc, kw1, kb1, kw2, kb2 = jax.random.split(key, 8)

    x = jax.random.normal(kx, (B, C, H, W), dtype=jnp.float32)
    sigma = jax.random.uniform(ks, (B,), dtype=jnp.float32, minval=0.1, maxval=2.0)
    uncond = jax.random.normal(ku, (B, D), dtype=jnp.float32)
    cond = jax.random.normal(kc, (B, D), dtype=jnp.float32)

    # deterministic synthetic inner-model parameters
    params = {
        "wx": jax.random.normal(kw1, (C, C), dtype=jnp.float32) * 0.3,
        "bx": jax.random.normal(kb1, (1, C), dtype=jnp.float32) * 0.1,
        "wc": jax.random.normal(kw2, (D, C), dtype=jnp.float32) * 0.3,
        "bc": jax.random.normal(kb2, (1, C), dtype=jnp.float32) * 0.1,
    }

    fwd = jax.jit(cfg_denoiser_forward)          # cond_scale is a runtime scalar
    out = fwd(x, sigma, uncond, cond, cond_scale, params)
    out = jax.block_until_ready(out)

    ref = cfg_denoiser_ref(x, sigma, uncond, cond, cond_scale, params)
    np.testing.assert_allclose(np.asarray(out), np.asarray(ref),
                               rtol=1e-5, atol=1e-5)
    print("KERNEL_OK")
</pallas_src>

<mosaic_0001>
module attributes {stable_mosaic.version = 11 : i64} {
  func.func @_cfg_denoiser_kernel(%arg0: memref<16xf32, #tpu.memory_space<smem>>, %arg1: memref<4xf32, #tpu.memory_space<smem>>, %arg2: memref<8x256xf32, #tpu.memory_space<vmem>>, %arg3: memref<8x2xf32, #tpu.memory_space<vmem>>, %arg4: memref<8x256xf32, #tpu.memory_space<vmem>>, %arg5: memref<8x256xf32, #tpu.memory_space<vmem>>) attributes {dimension_semantics = [], scalar_prefetch = 0 : i64, scratch_operands = 1 : i64, tpu.core_type = #tpu.core_type<tc>} {
    %c0 = arith.constant 0 : index
    %c0_0 = arith.constant 0 : index
    %0 = vector.load %arg2[%c0, %c0_0] : memref<8x256xf32, #tpu.memory_space<vmem>>, vector<8x256xf32>
    %1 = vector.extract_strided_slice %0 {offsets = [0, 0], sizes = [1, 256], strides = [1, 1]} : vector<8x256xf32> to vector<1x256xf32>
    %c0_1 = arith.constant 0 : index
    %2 = memref.load %arg0[%c0_1] : memref<16xf32, #tpu.memory_space<smem>>
    %3 = vector.broadcast %2 : f32 to vector<1x256xf32>
    %4 = arith.mulf %1, %3 : vector<1x256xf32>
    %5 = vector.extract_strided_slice %0 {offsets = [1, 0], sizes = [1, 256], strides = [1, 1]} : vector<8x256xf32> to vector<1x256xf32>
    %c4 = arith.constant 4 : index
    %6 = memref.load %arg0[%c4] : memref<16xf32, #tpu.memory_space<smem>>
    %7 = vector.broadcast %6 : f32 to vector<1x256xf32>
    %8 = arith.mulf %5, %7 : vector<1x256xf32>
    %9 = arith.addf %4, %8 : vector<1x256xf32>
    %10 = vector.extract_strided_slice %0 {offsets = [2, 0], sizes = [1, 256], strides = [1, 1]} : vector<8x256xf32> to vector<1x256xf32>
    %c8 = arith.constant 8 : index
    %11 = memref.load %arg0[%c8] : memref<16xf32, #tpu.memory_space<smem>>
    %12 = vector.broadcast %11 : f32 to vector<1x256xf32>
    %13 = arith.mulf %10, %12 : vector<1x256xf32>
    %14 = arith.addf %9, %13 : vector<1x256xf32>
    %15 = vector.extract_strided_slice %0 {offsets = [3, 0], sizes = [1, 256], strides = [1, 1]} : vector<8x256xf32> to vector<1x256xf32>
    %c12 = arith.constant 12 : index
    %16 = memref.load %arg0[%c12] : memref<16xf32, #tpu.memory_space<smem>>
    %17 = vector.broadcast %16 : f32 to vector<1x256xf32>
    %18 = arith.mulf %15, %17 : vector<1x256xf32>
    %19 = arith.addf %14, %18 : vector<1x256xf32>
    %c0_2 = arith.constant 0 : index
    %20 = memref.load %arg1[%c0_2] : memref<4xf32, #tpu.memory_space<smem>>
    %21 = vector.broadcast %20 : f32 to vector<1x256xf32>
    %22 = arith.addf %19, %21 : vector<1x256xf32>
    %c0_3 = arith.constant 0 : index
    %c0_4 = arith.constant 0 : index
    %23 = vector.load %arg5[%c0_3, %c0_4] : memref<8x256xf32, #tpu.memory_space<vmem>>, vector<1x256xf32>
    tpu.vector_store %arg5[%c0_3, %c0_4], %22 {strides = array<i32>} : memref<8x256xf32, #tpu.memory_space<vmem>>, vector<1x256xf32>,
    %24 = vector.extract_strided_slice %0 {offsets = [0, 0], sizes = [1, 256], strides = [1, 1]} : vector<8x256xf32> to vector<1x256xf32>
    %c1 = arith.constant 1 : index
    %25 = memref.load %arg0[%c1] : memref<16xf32, #tpu.memory_space<smem>>
    %26 = vector.broadcast %25 : f32 to vector<1x256xf32>
    %27 = arith.mulf %24, %26 : vector<1x256xf32>
    %28 = vector.extract_strided_slice %0 {offsets = [1, 0], sizes = [1, 256], strides = [1, 1]} : vector<8x256xf32> to vector<1x256xf32>
    %c5 = arith.constant 5 : index
    %29 = memref.load %arg0[%c5] : memref<16xf32, #tpu.memory_space<smem>>
    %30 = vector.broadcast %29 : f32 to vector<1x256xf32>
    %31 = arith.mulf %28, %30 : vector<1x256xf32>
    %32 = arith.addf %27, %31 : vector<1x256xf32>
    %33 = vector.extract_strided_slice %0 {offsets = [2, 0], sizes = [1, 256], strides = [1, 1]} : vector<8x256xf32> to vector<1x256xf32>
    %c9 = arith.constant 9 : index
    %34 = memref.load %arg0[%c9] : memref<16xf32, #tpu.memory_space<smem>>
    %35 = vector.broadcast %34 : f32 to vector<1x256xf32>
    %36 = arith.mulf %33, %35 : vector<1x256xf32>
    %37 = arith.addf %32, %36 : vector<1x256xf32>
    %38 = vector.extract_strided_slice %0 {offsets = [3, 0], sizes = [1, 256], strides = [1, 1]} : vector<8x256xf32> to vector<1x256xf32>
    %c13 = arith.constant 13 : index
    %39 = memref.load %arg0[%c13] : memref<16xf32, #tpu.memory_space<smem>>
    %40 = vector.broadcast %39 : f32 to vector<1x256xf32>
    %41 = arith.mulf %38, %40 : vector<1x256xf32>
    %42 = arith.addf %37, %41 : vector<1x256xf32>
    %c1_5 = arith.constant 1 : index
    %43 = memref.load %arg1[%c1_5] : memref<4xf32, #tpu.memory_space<smem>>
    %44 = vector.broadcast %43 : f32 to vector<1x256xf32>
    %45 = arith.addf %42, %44 : vector<1x256xf32>
    %c1_6 = arith.constant 1 : index
    %c0_7 = arith.constant 0 : index
    %46 = vector.load %arg5[%c1_6, %c0_7] : memref<8x256xf32, #tpu.memory_space<vmem>>, vector<1x256xf32>
    tpu.vector_store %arg5[%c1_6, %c0_7], %45 {strides = array<i32>} : memref<8x256xf32, #tpu.memory_space<vmem>>, vector<1x256xf32>,
    %47 = vector.extract_strided_slice %0 {offsets = [0, 0], sizes = [1, 256], strides = [1, 1]} : vector<8x256xf32> to vector<1x256xf32>
    %c2 = arith.constant 2 : index
    %48 = memref.load %arg0[%c2] : memref<16xf32, #tpu.memory_space<smem>>
    %49 = vector.broadcast %48 : f32 to vector<1x256xf32>
    %50 = arith.mulf %47, %49 : vector<1x256xf32>
    %51 = vector.extract_strided_slice %0 {offsets = [1, 0], sizes = [1, 256], strides = [1, 1]} : vector<8x256xf32> to vector<1x256xf32>
    %c6 = arith.constant 6 : index
    %52 = memref.load %arg0[%c6] : memref<16xf32, #tpu.memory_space<smem>>
    %53 = vector.broadcast %52 : f32 to vector<1x256xf32>
    %54 = arith.mulf %51, %53 : vector<1x256xf32>
    %55 = arith.addf %50, %54 : vector<1x256xf32>
    %56 = vector.extract_strided_slice %0 {offsets = [2, 0], sizes = [1, 256], strides = [1, 1]} : vector<8x256xf32> to vector<1x256xf32>
    %c10 = arith.constant 10 : index
    %57 = memref.load %arg0[%c10] : memref<16xf32, #tpu.memory_space<smem>>
    %58 = vector.broadcast %57 : f32 to vector<1x256xf32>
    %59 = arith.mulf %56, %58 : vector<1x256xf32>
    %60 = arith.addf %55, %59 : vector<1x256xf32>
    %61 = vector.extract_strided_slice %0 {offsets = [3, 0], sizes = [1, 256], strides = [1, 1]} : vector<8x256xf32> to vector<1x256xf32>
    %c14 = arith.constant 14 : index
    %62 = memref.load %arg0[%c14] : memref<16xf32, #tpu.memory_space<smem>>
    %63 = vector.broadcast %62 : f32 to vector<1x256xf32>
    %64 = arith.mulf %61, %63 : vector<1x256xf32>
    %65 = arith.addf %60, %64 : vector<1x256xf32>
    %c2_8 = arith.constant 2 : index
    %66 = memref.load %arg1[%c2_8] : memref<4xf32, #tpu.memory_space<smem>>
    %67 = vector.broadcast %66 : f32 to vector<1x256xf32>
    %68 = arith.addf %65, %67 : vector<1x256xf32>
    %c2_9 = arith.constant 2 : index
    %c0_10 = arith.constant 0 : index
    %69 = vector.load %arg5[%c2_9, %c0_10] : memref<8x256xf32, #tpu.memory_space<vmem>>, vector<1x256xf32>
    tpu.vector_store %arg5[%c2_9, %c0_10], %68 {strides = array<i32>} : memref<8x256xf32, #tpu.memory_space<vmem>>, vector<1x256xf32>,
    %70 = vector.extract_strided_slice %0 {offsets = [0, 0], sizes = [1, 256], strides = [1, 1]} : vector<8x256xf32> to vector<1x256xf32>
    %c3 = arith.constant 3 : index
    %71 = memref.load %arg0[%c3] : memref<16xf32, #tpu.memory_space<smem>>
    %72 = vector.broadcast %71 : f32 to vector<1x256xf32>
    %73 = arith.mulf %70, %72 : vector<1x256xf32>
    %74 = vector.extract_strided_slice %0 {offsets = [1, 0], sizes = [1, 256], strides = [1, 1]} : vector<8x256xf32> to vector<1x256xf32>
    %c7 = arith.constant 7 : index
    %75 = memref.load %arg0[%c7] : memref<16xf32, #tpu.memory_space<smem>>
    %76 = vector.broadcast %75 : f32 to vector<1x256xf32>
    %77 = arith.mulf %74, %76 : vector<1x256xf32>
    %78 = arith.addf %73, %77 : vector<1x256xf32>
    %79 = vector.extract_strided_slice %0 {offsets = [2, 0], sizes = [1, 256], strides = [1, 1]} : vector<8x256xf32> to vector<1x256xf32>
    %c11 = arith.constant 11 : index
    %80 = memref.load %arg0[%c11] : memref<16xf32, #tpu.memory_space<smem>>
    %81 = vector.broadcast %80 : f32 to vector<1x256xf32>
    %82 = arith.mulf %79, %81 : vector<1x256xf32>
    %83 = arith.addf %78, %82 : vector<1x256xf32>
    %84 = vector.extract_strided_slice %0 {offsets = [3, 0], sizes = [1, 256], strides = [1, 1]} : vector<8x256xf32> to vector<1x256xf32>
    %c15 = arith.constant 15 : index
    %85 = memref.load %arg0[%c15] : memref<16xf32, #tpu.memory_space<smem>>
    %86 = vector.broadcast %85 : f32 to vector<1x256xf32>
    %87 = arith.mulf %84, %86 : vector<1x256xf32>
    %88 = arith.addf %83, %87 : vector<1x256xf32>
    %c3_11 = arith.constant 3 : index
    %89 = memref.load %arg1[%c3_11] : memref<4xf32, #tpu.memory_space<smem>>
    %90 = vector.broadcast %89 : f32 to vector<1x256xf32>
    %91 = arith.addf %88, %90 : vector<1x256xf32>
    %c3_12 = arith.constant 3 : index
    %c0_13 = arith.constant 0 : index
    %92 = vector.load %arg5[%c3_12, %c0_13] : memref<8x256xf32, #tpu.memory_space<vmem>>, vector<1x256xf32>
    tpu.vector_store %arg5[%c3_12, %c0_13], %91 {strides = array<i32>} : memref<8x256xf32, #tpu.memory_space<vmem>>, vector<1x256xf32>,
    %93 = vector.extract_strided_slice %0 {offsets = [4, 0], sizes = [1, 256], strides = [1, 1]} : vector<8x256xf32> to vector<1x256xf32>
    %c0_14 = arith.constant 0 : index
    %94 = memref.load %arg0[%c0_14] : memref<16xf32, #tpu.memory_space<smem>>
    %95 = vector.broadcast %94 : f32 to vector<1x256xf32>
    %96 = arith.mulf %93, %95 : vector<1x256xf32>
    %97 = vector.extract_strided_slice %0 {offsets = [5, 0], sizes = [1, 256], strides = [1, 1]} : vector<8x256xf32> to vector<1x256xf32>
    %c4_15 = arith.constant 4 : index
    %98 = memref.load %arg0[%c4_15] : memref<16xf32, #tpu.memory_space<smem>>
    %99 = vector.broadcast %98 : f32 to vector<1x256xf32>
    %100 = arith.mulf %97, %99 : vector<1x256xf32>
    %101 = arith.addf %96, %100 : vector<1x256xf32>
    %102 = vector.extract_strided_slice %0 {offsets = [6, 0], sizes = [1, 256], strides = [1, 1]} : vector<8x256xf32> to vector<1x256xf32>
    %c8_16 = arith.constant 8 : index
    %103 = memref.load %arg0[%c8_16] : memref<16xf32, #tpu.memory_space<smem>>
    %104 = vector.broadcast %103 : f32 to vector<1x256xf32>
    %105 = arith.mulf %102, %104 : vector<1x256xf32>
    %106 = arith.addf %101, %105 : vector<1x256xf32>
    %107 = vector.extract_strided_slice %0 {offsets = [7, 0], sizes = [1, 256], strides = [1, 1]} : vector<8x256xf32> to vector<1x256xf32>
    %c12_17 = arith.constant 12 : index
    %108 = memref.load %arg0[%c12_17] : memref<16xf32, #tpu.memory_space<smem>>
    %109 = vector.broadcast %108 : f32 to vector<1x256xf32>
    %110 = arith.mulf %107, %109 : vector<1x256xf32>
    %111 = arith.addf %106, %110 : vector<1x256xf32>
    %c0_18 = arith.constant 0 : index
    %112 = memref.load %arg1[%c0_18] : memref<4xf32, #tpu.memory_space<smem>>
    %113 = vector.broadcast %112 : f32 to vector<1x256xf32>
    %114 = arith.addf %111, %113 : vector<1x256xf32>
    %c4_19 = arith.constant 4 : index
    %c0_20 = arith.constant 0 : index
    %115 = vector.load %arg5[%c4_19, %c0_20] : memref<8x256xf32, #tpu.memory_space<vmem>>, vector<1x256xf32>
    tpu.vector_store %arg5[%c4_19, %c0_20], %114 {strides = array<i32>} : memref<8x256xf32, #tpu.memory_space<vmem>>, vector<1x256xf32>,
    %116 = vector.extract_strided_slice %0 {offsets = [4, 0], sizes = [1, 256], strides = [1, 1]} : vector<8x256xf32> to vector<1x256xf32>
    %c1_21 = arith.constant 1 : index
    %117 = memref.load %arg0[%c1_21] : memref<16xf32, #tpu.memory_space<smem>>
    %118 = vector.broadcast %117 : f32 to vector<1x256xf32>
    %119 = arith.mulf %116, %118 : vector<1x256xf32>
    %120 = vector.extract_strided_slice %0 {offsets = [5, 0], sizes = [1, 256], strides = [1, 1]} : vector<8x256xf32> to vector<1x256xf32>
    %c5_22 = arith.constant 5 : index
    %121 = memref.load %arg0[%c5_22] : memref<16xf32, #tpu.memory_space<smem>>
    %122 = vector.broadcast %121 : f32 to vector<1x256xf32>
    %123 = arith.mulf %120, %122 : vector<1x256xf32>
    %124 = arith.addf %119, %123 : vector<1x256xf32>
    %125 = vector.extract_strided_slice %0 {offsets = [6, 0], sizes = [1, 256], strides = [1, 1]} : vector<8x256xf32> to vector<1x256xf32>
    %c9_23 = arith.constant 9 : index
    %126 = memref.load %arg0[%c9_23] : memref<16xf32, #tpu.memory_space<smem>>
    %127 = vector.broadcast %126 : f32 to vector<1x256xf32>
    %128 = arith.mulf %125, %127 : vector<1x256xf32>
    %129 = arith.addf %124, %128 : vector<1x256xf32>
    %130 = vector.extract_strided_slice %0 {offsets = [7, 0], sizes = [1, 256], strides = [1, 1]} : vector<8x256xf32> to vector<1x256xf32>
    %c13_24 = arith.constant 13 : index
    %131 = memref.load %arg0[%c13_24] : memref<16xf32, #tpu.memory_space<smem>>
    %132 = vector.broadcast %131 : f32 to vector<1x256xf32>
    %133 = arith.mulf %130, %132 : vector<1x256xf32>
    %134 = arith.addf %129, %133 : vector<1x256xf32>
    %c1_25 = arith.constant 1 : index
    %135 = memref.load %arg1[%c1_25] : memref<4xf32, #tpu.memory_space<smem>>
    %136 = vector.broadcast %135 : f32 to vector<1x256xf32>
    %137 = arith.addf %134, %136 : vector<1x256xf32>
    %c5_26 = arith.constant 5 : index
    %c0_27 = arith.constant 0 : index
    %138 = vector.load %arg5[%c5_26, %c0_27] : memref<8x256xf32, #tpu.memory_space<vmem>>, vector<1x256xf32>
    tpu.vector_store %arg5[%c5_26, %c0_27], %137 {strides = array<i32>} : memref<8x256xf32, #tpu.memory_space<vmem>>, vector<1x256xf32>,
    %139 = vector.extract_strided_slice %0 {offsets = [4, 0], sizes = [1, 256], strides = [1, 1]} : vector<8x256xf32> to vector<1x256xf32>
    %c2_28 = arith.constant 2 : index
    %140 = memref.load %arg0[%c2_28] : memref<16xf32, #tpu.memory_space<smem>>
    %141 = vector.broadcast %140 : f32 to vector<1x256xf32>
    %142 = arith.mulf %139, %141 : vector<1x256xf32>
    %143 = vector.extract_strided_slice %0 {offsets = [5, 0], sizes = [1, 256], strides = [1, 1]} : vector<8x256xf32> to vector<1x256xf32>
    %c6_29 = arith.constant 6 : index
    %144 = memref.load %arg0[%c6_29] : memref<16xf32, #tpu.memory_space<smem>>
    %145 = vector.broadcast %144 : f32 to vector<1x256xf32>
    %146 = arith.mulf %143, %145 : vector<1x256xf32>
    %147 = arith.addf %142, %146 : vector<1x256xf32>
    %148 = vector.extract_strided_slice %0 {offsets = [6, 0], sizes = [1, 256], strides = [1, 1]} : vector<8x256xf32> to vector<1x256xf32>
    %c10_30 = arith.constant 10 : index
    %149 = memref.load %arg0[%c10_30] : memref<16xf32, #tpu.memory_space<smem>>
    %150 = vector.broadcast %149 : f32 to vector<1x256xf32>
    %151 = arith.mulf %148, %150 : vector<1x256xf32>
    %152 = arith.addf %147, %151 : vector<1x256xf32>
    %153 = vector.extract_strided_slice %0 {offsets = [7, 0], sizes = [1, 256], strides = [1, 1]} : vector<8x256xf32> to vector<1x256xf32>
    %c14_31 = arith.constant 14 : index
    %154 = memref.load %arg0[%c14_31] : memref<16xf32, #tpu.memory_space<smem>>
    %155 = vector.broadcast %154 : f32 to vector<1x256xf32>
    %156 = arith.mulf %153, %155 : vector<1x256xf32>
    %157 = arith.addf %152, %156 : vector<1x256xf32>
    %c2_32 = arith.constant 2 : index
    %158 = memref.load %arg1[%c2_32] : memref<4xf32, #tpu.memory_space<smem>>
    %159 = vector.broadcast %158 : f32 to vector<1x256xf32>
    %160 = arith.addf %157, %159 : vector<1x256xf32>
    %c6_33 = arith.constant 6 : index
    %c0_34 = arith.constant 0 : index
    %161 = vector.load %arg5[%c6_33, %c0_34] : memref<8x256xf32, #tpu.memory_space<vmem>>, vector<1x256xf32>
    tpu.vector_store %arg5[%c6_33, %c0_34], %160 {strides = array<i32>} : memref<8x256xf32, #tpu.memory_space<vmem>>, vector<1x256xf32>,
    %162 = vector.extract_strided_slice %0 {offsets = [4, 0], sizes = [1, 256], strides = [1, 1]} : vector<8x256xf32> to vector<1x256xf32>
    %c3_35 = arith.constant 3 : index
    %163 = memref.load %arg0[%c3_35] : memref<16xf32, #tpu.memory_space<smem>>
    %164 = vector.broadcast %163 : f32 to vector<1x256xf32>
    %165 = arith.mulf %162, %164 : vector<1x256xf32>
    %166 = vector.extract_strided_slice %0 {offsets = [5, 0], sizes = [1, 256], strides = [1, 1]} : vector<8x256xf32> to vector<1x256xf32>
    %c7_36 = arith.constant 7 : index
    %167 = memref.load %arg0[%c7_36] : memref<16xf32, #tpu.memory_space<smem>>
    %168 = vector.broadcast %167 : f32 to vector<1x256xf32>
    %169 = arith.mulf %166, %168 : vector<1x256xf32>
    %170 = arith.addf %165, %169 : vector<1x256xf32>
    %171 = vector.extract_strided_slice %0 {offsets = [6, 0], sizes = [1, 256], strides = [1, 1]} : vector<8x256xf32> to vector<1x256xf32>
    %c11_37 = arith.constant 11 : index
    %172 = memref.load %arg0[%c11_37] : memref<16xf32, #tpu.memory_space<smem>>
    %173 = vector.broadcast %172 : f32 to vector<1x256xf32>
    %174 = arith.mulf %171, %173 : vector<1x256xf32>
    %175 = arith.addf %170, %174 : vector<1x256xf32>
    %176 = vector.extract_strided_slice %0 {offsets = [7, 0], sizes = [1, 256], strides = [1, 1]} : vector<8x256xf32> to vector<1x256xf32>
    %c15_38 = arith.constant 15 : index
    %177 = memref.load %arg0[%c15_38] : memref<16xf32, #tpu.memory_space<smem>>
    %178 = vector.broadcast %177 : f32 to vector<1x256xf32>
    %179 = arith.mulf %176, %178 : vector<1x256xf32>
    %180 = arith.addf %175, %179 : vector<1x256xf32>
    %c3_39 = arith.constant 3 : index
    %181 = memref.load %arg1[%c3_39] : memref<4xf32, #tpu.memory_space<smem>>
    %182 = vector.broadcast %181 : f32 to vector<1x256xf32>
    %183 = arith.addf %180, %182 : vector<1x256xf32>
    %c7_40 = arith.constant 7 : index
    %c0_41 = arith.constant 0 : index
    %184 = vector.load %arg5[%c7_40, %c0_41] : memref<8x256xf32, #tpu.memory_space<vmem>>, vector<1x256xf32>
    tpu.vector_store %arg5[%c7_40, %c0_41], %183 {strides = array<i32>} : memref<8x256xf32, #tpu.memory_space<vmem>>, vector<1x256xf32>,
    %c0_42 = arith.constant 0 : index
    %c0_43 = arith.constant 0 : index
    %185 = vector.load %arg3[%c0_42, %c0_43] : memref<8x2xf32, #tpu.memory_space<vmem>>, vector<8x1xf32>
    %c0_44 = arith.constant 0 : index
    %c1_45 = arith.constant 1 : index
    %186 = vector.load %arg3[%c0_44, %c1_45] : memref<8x2xf32, #tpu.memory_space<vmem>>, vector<8x1xf32>
    %c0_46 = arith.constant 0 : index
    %c0_47 = arith.constant 0 : index
    %187 = vector.load %arg5[%c0_46, %c0_47] : memref<8x256xf32, #tpu.memory_space<vmem>>, vector<8x256xf32>
    %188 = math.tanh %187 : vector<8x256xf32>
    %189 = vector.broadcast %185 : vector<8x1xf32> to vector<8x256xf32>
    %190 = arith.mulf %188, %189 : vector<8x256xf32>
    %191 = vector.broadcast %186 : vector<8x1xf32> to vector<8x256xf32>
    %192 = arith.addf %190, %191 : vector<8x256xf32>
    %c0_48 = arith.constant 0 : index
    %c0_49 = arith.constant 0 : index
    %193 = vector.load %arg4[%c0_48, %c0_49] : memref<8x256xf32, #tpu.memory_space<vmem>>, vector<8x256xf32>
    tpu.vector_store %arg4[%c0_48, %c0_49], %192 {strides = array<i32>} : memref<8x256xf32, #tpu.memory_space<vmem>>, vector<8x256xf32>,
    return
  }
}

</mosaic_0001>

<llo_original>
// kernel: cfg_denoiser_forward.1
$region0: #{cfg_denoiser_forward.1}
  #allocation0 [shape = 'u32[]', space=smem, size = 0x4, offset = 0x4, fixed_abs, tag = 'smem constant byte address 0x4 - core index']
  #allocation1 [shape = 'u32[72,128]{1,0:T(1,128)}', space=vmem, size = 0x9000, scoped, tag = 'internal scratch']
  #allocation2 [shape = 'f32[8,256]{1,0:T(8,128)}', space=vmem, size = 0x2000, scoped, tag = 'scratch operand']
  %s0 = inlined_call_operand.vmem [shape: f32[16], index: 0, kind: input, shape index: {}]
  %s1 = inlined_call_operand.vmem [shape: f32[4], index: 1, kind: input, shape index: {}]
  %s2 = inlined_call_operand.vmem [shape: f32[8,256], index: 2, kind: input, shape index: {}]
  %s3 = inlined_call_operand.vmem [shape: f32[8,2], index: 3, kind: input, shape index: {}]
  %s4 = inlined_call_operand.vmem [shape: f32[8,256], index: 4, kind: output, shape index: {}]
  %s5 = sld [smem:[#allocation0]]
  $region34: #{cfg_denoiser_forward.1} parent=0
    _
  %s7 = ssub.s32 1, %s5
  %s8 = scalar_select 0, %s7, %s5
  $region1: #{cfg_denoiser_forward.1} parent=0
    #allocation3 [shape = 'u8[512]{0}', space=smem, size = 0x200, scoped, tag = 'input window, operand 0, single buffered']
    #allocation4 [shape = 's32[1]{0}', space=sflag, size = 0x4, scoped, tag = 'scoped memory for cfg_denoiser_forward.1']
    #allocation5 [shape = 'u8[512]{0}', space=smem, size = 0x200, scoped, tag = 'input window, operand 1, single buffered']
    #allocation6 [shape = 's32[1]{0}', space=sflag, size = 0x4, scoped, tag = 'scoped memory for cfg_denoiser_forward.1']
    %9 = vsyncpa [#allocation4], 0
    %10 = vsyncpa [#allocation6], 0
    // Predicated region
    $region2: #{cfg_denoiser_forward.1} parent=1 // pred_check
      _
    $region3: #{cfg_denoiser_forward.1} parent=1 // pred_check_branch
      %12 = sbr.rel (0) target = $region5
    $region4: #{cfg_denoiser_forward.1} parent=1 // pred_region
      %14 = vsyncadd [#allocation4], 0
      %s16 = sshll.u32 %s0, 4
      %s17 = int_to_ptr.vmem [resolvable:$true] %s16
      %19 = dma.vmem_to_smem %s17, 16, [#allocation3], [#allocation4]
    $region5: #{cfg_denoiser_forward.1} parent=1 // pred_fallthru
      _
    // Predicated region
    $region6: #{cfg_denoiser_forward.1} parent=1 // pred_check
      _
    $region7: #{cfg_denoiser_forward.1} parent=1 // pred_check_branch
      %21 = sbr.rel (0) target = $region9
    $region8: #{cfg_denoiser_forward.1} parent=1 // pred_region
      %23 = vsyncadd [#allocation6], 0
      %s25 = sshll.u32 %s1, 4
      %s26 = int_to_ptr.vmem [resolvable:$true] %s25
      %28 = dma.vmem_to_smem %s26, 16, [#allocation5], [#allocation6]
    $region9: #{cfg_denoiser_forward.1} parent=1 // pred_fallthru
      _
    // Predicated region
    $region10: #{cfg_denoiser_forward.1} parent=1 // pred_check
      _
    $region11: #{cfg_denoiser_forward.1} parent=1 // pred_check_branch
      %30 = sbr.rel (0) target = $region13
    $region12: #{cfg_denoiser_forward.1} parent=1 // pred_region
      _
    $region13: #{cfg_denoiser_forward.1} parent=1 // pred_fallthru
      _
    // Predicated region
    $region14: #{cfg_denoiser_forward.1} parent=1 // pred_check
      _
    $region15: #{cfg_denoiser_forward.1} parent=1 // pred_check_branch
      %32 = sbr.rel (0) target = $region17
    $region16: #{cfg_denoiser_forward.1} parent=1 // pred_region
      _
    $region17: #{cfg_denoiser_forward.1} parent=1 // pred_fallthru
      _
    // Predicated region
    $region18: #{cfg_denoiser_forward.1} parent=1 // pred_check
      _
    $region19: #{cfg_denoiser_forward.1} parent=1 // pred_check_branch
      %34 = sbr.rel (0) target = $region21
    $region20: #{cfg_denoiser_forward.1} parent=1 // pred_region
      %36 = dma.done [#allocation4], 16
    $region21: #{cfg_denoiser_forward.1} parent=1 // pred_fallthru
      _
    // Predicated region
    $region22: #{cfg_denoiser_forward.1} parent=1 // pred_check
      _
    $region23: #{cfg_denoiser_forward.1} parent=1 // pred_check_branch
      %38 = sbr.rel (0) target = $region25
    $region24: #{cfg_denoiser_forward.1} parent=1 // pred_region
      %40 = dma.done [#allocation6], 16
    $region25: #{cfg_denoiser_forward.1} parent=1 // pred_fallthru
      _
    %41 = sfence
    %v42 = vld [vmem:[%s2] sm:$0xff]
    %v43 = vld [vmem:[%s2 + $0x8] sm:$0xff]
    %s44 = sld [smem:[#allocation3]]
    %v45 = vstv %s44
    %v46 = vmul.f32 %v42, %v45
    %v47 = vmul.f32 %v43, %v45
    %s48 = sld [smem:[#allocation3 + $0x4]]
    %v49 = vstv %s48
    %v50 = vmul.f32 %v42, %v49
    %v51 = vmul.f32 %v43, %v49
    %v54 = vrot.slane %v50, 1
    %v55 = vrot.slane %v51, 1
    %v58 = vadd.f32 %v46, %v54
    %v59 = vadd.f32 %v47, %v55
    %s60 = sld [smem:[#allocation3 + $0x8]]
    %v61 = vstv %s60
    %v62 = vmul.f32 %v42, %v61
    %v63 = vmul.f32 %v43, %v61
    %v66 = vrot.slane %v62, 2
    %v67 = vrot.slane %v63, 2
    %v70 = vadd.f32 %v58, %v66
    %v71 = vadd.f32 %v59, %v67
    %s72 = sld [smem:[#allocation3 + $0xc]]
    %v73 = vstv %s72
    %v74 = vmul.f32 %v42, %v73
    %v75 = vmul.f32 %v43, %v73
    %v78 = vrot.slane %v74, 3
    %v79 = vrot.slane %v75, 3
    %v82 = vadd.f32 %v70, %v78
    %v83 = vadd.f32 %v71, %v79
    %s84 = sld [smem:[#allocation5]]
    %v85 = vstv %s84
    %v86 = vadd.f32 %v82, %v85
    %v87 = vadd.f32 %v83, %v85
    %v90 = vrot.slane %v87, 7
    %vm91 = vcmask 1040384
    %v92 = vsel %vm91, %v86, %v90
    %v94 = vlaneseq
    %vm95 = vcmp.ge.s32.totalorder %v94, 0
    %vm96 = vcmp.lt.s32.totalorder %v94, 256
    %vm97 = vmand %vm95, %vm96
    %98 = vst.msk [vmem:[#allocation2] ss:$8 sm:$0x3] %vm97, %v92
    %99 = vst.msk [vmem:[#allocation2] ss:$8 sm:$0x0] %vm97, %v92
    %s100 = sld [smem:[#allocation3 + $0x1]]
    %v101 = vstv %s100
    %v102 = vmul.f32 %v42, %v101
    %v103 = vmul.f32 %v43, %v101
    %s104 = sld [smem:[#allocation3 + $0x5]]
    %v105 = vstv %s104
    %v106 = vmul.f32 %v42, %v105
    %v107 = vmul.f32 %v43, %v105
    %v110 = vrot.slane %v106, 1
    %v111 = vrot.slane %v107, 1
    %v114 = vadd.f32 %v102, %v110
    %v115 = vadd.f32 %v103, %v111
    %s116 = sld [smem:[#allocation3 + $0x9]]
    %v117 = vstv %s116
    %v118 = vmul.f32 %v42, %v117
    %v119 = vmul.f32 %v43, %v117
    %v122 = vrot.slane %v118, 2
    %v123 = vrot.slane %v119, 2
    %v126 = vadd.f32 %v114, %v122
    %v127 = vadd.f32 %v115, %v123
    %s128 = sld [smem:[#allocation3 + $0xd]]
    %v129 = vstv %s128
    %v130 = vmul.f32 %v42, %v129
    %v131 = vmul.f32 %v43, %v129
    %v134 = vrot.slane %v130, 3
    %v135 = vrot.slane %v131, 3
    %v138 = vadd.f32 %v126, %v134
    %v139 = vadd.f32 %v127, %v135
    %s140 = sld [smem:[#allocation5 + $0x1]]
    %v141 = vstv %s140
    %v142 = vadd.f32 %v138, %v141
    %v143 = vadd.f32 %v139, %v141
    %v146 = vrot.slane %v143, 7
    %v147 = vsel %vm91, %v142, %v146
    %s149 = scalar_lea.vmem [#allocation2], 1
    %150 = vst.msk [vmem:[%s149] ss:$8 sm:$0x3] %vm97, %v147
    %151 = vst.msk [vmem:[%s149] ss:$8 sm:$0x0] %vm97, %v147
    %s152 = sld [smem:[#allocation3 + $0x2]]
    %v153 = vstv %s152
    %v154 = vmul.f32 %v42, %v153
    %v155 = vmul.f32 %v43, %v153
    %s156 = sld [smem:[#allocation3 + $0x6]]
    %v157 = vstv %s156
    %v158 = vmul.f32 %v42, %v157
    %v159 = vmul.f32 %v43, %v157
    %v162 = vrot.slane %v158, 1
    %v163 = vrot.slane %v159, 1
    %v166 = vadd.f32 %v154, %v162
    %v167 = vadd.f32 %v155, %v163
    %s168 = sld [smem:[#allocation3 + $0xa]]
    %v169 = vstv %s168
    %v170 = vmul.f32 %v42, %v169
    %v171 = vmul.f32 %v43, %v169
    %v174 = vrot.slane %v170, 2
    %v175 = vrot.slane %v171, 2
    %v178 = vadd.f32 %v166, %v174
    %v179 = vadd.f32 %v167, %v175
    %s180 = sld [smem:[#allocation3 + $0xe]]
    %v181 = vstv %s180
    %v182 = vmul.f32 %v42, %v181
    %v183 = vmul.f32 %v43, %v181
    %v186 = vrot.slane %v182, 3
    %v187 = vrot.slane %v183, 3
    %v190 = vadd.f32 %v178, %v186
    %v191 = vadd.f32 %v179, %v187
    %s192 = sld [smem:[#allocation5 + $0x2]]
    %v193 = vstv %s192
    %v194 = vadd.f32 %v190, %v193
    %v195 = vadd.f32 %v191, %v193
    %v198 = vrot.slane %v195, 7
    %v199 = vsel %vm91, %v194, %v198
    %s201 = scalar_lea.vmem [#allocation2], 2
    %202 = vst.msk [vmem:[%s201] ss:$8 sm:$0x3] %vm97, %v199
    %203 = vst.msk [vmem:[%s201] ss:$8 sm:$0x0] %vm97, %v199
    %s204 = sld [smem:[#allocation3 + $0x3]]
    %v205 = vstv %s204
    %v206 = vmul.f32 %v42, %v205
    %v207 = vmul.f32 %v43, %v205
    %s208 = sld [smem:[#allocation3 + $0x7]]
    %v209 = vstv %s208
    %v210 = vmul.f32 %v42, %v209
    %v211 = vmul.f32 %v43, %v209
    %v214 = vrot.slane %v210, 1
    %v215 = vrot.slane %v211, 1
    %v218 = vadd.f32 %v206, %v214
    %v219 = vadd.f32 %v207, %v215
    %s220 = sld [smem:[#allocation3 + $0xb]]
    %v221 = vstv %s220
    %v222 = vmul.f32 %v42, %v221
    %v223 = vmul.f32 %v43, %v221
    %v226 = vrot.slane %v222, 2
    %v227 = vrot.slane %v223, 2
    %v230 = vadd.f32 %v218, %v226
    %v231 = vadd.f32 %v219, %v227
    %s232 = sld [smem:[#allocation3 + $0xf]]
    %v233 = vstv %s232
    %v234 = vmul.f32 %v42, %v233
    %v235 = vmul.f32 %v43, %v233
    %v238 = vrot.slane %v234, 3
    %v239 = vrot.slane %v235, 3
    %v242 = vadd.f32 %v230, %v238
    %v243 = vadd.f32 %v231, %v239
    %s244 = sld [smem:[#allocation5 + $0x3]]
    %v245 = vstv %s244
    %v246 = vadd.f32 %v242, %v245
    %v247 = vadd.f32 %v243, %v245
    %v250 = vrot.slane %v247, 7
    %v251 = vsel %vm91, %v246, %v250
    %s253 = scalar_lea.vmem [#allocation2], 3
    %254 = vst.msk [vmem:[%s253] ss:$8 sm:$0x3] %vm97, %v251
    %255 = vst.msk [vmem:[%s253] ss:$8 sm:$0x0] %vm97, %v251
    %s256 = sld [smem:[#allocation3]]
    %v257 = vstv %s256
    %v258 = vmul.f32 %v42, %v257
    %v259 = vmul.f32 %v43, %v257
    %s260 = sld [smem:[#allocation3 + $0x4]]
    %v261 = vstv %s260
    %v262 = vmul.f32 %v42, %v261
    %v263 = vmul.f32 %v43, %v261
    %v266 = vrot.slane %v262, 1
    %v267 = vrot.slane %v263, 1
    %v270 = vadd.f32 %v258, %v266
    %v271 = vadd.f32 %v259, %v267
    %s272 = sld [smem:[#allocation3 + $0x8]]
    %v273 = vstv %s272
    %v274 = vmul.f32 %v42, %v273
    %v275 = vmul.f32 %v43, %v273
    %v278 = vrot.slane %v274, 2
    %v279 = vrot.slane %v275, 2
    %v282 = vadd.f32 %v270, %v278
    %v283 = vadd.f32 %v271, %v279
    %s284 = sld [smem:[#allocation3 + $0xc]]
    %v285 = vstv %s284
    %v286 = vmul.f32 %v42, %v285
    %v287 = vmul.f32 %v43, %v285
    %v290 = vrot.slane %v286, 3
    %v291 = vrot.slane %v287, 3
    %v294 = vadd.f32 %v282, %v290
    %v295 = vadd.f32 %v283, %v291
    %s296 = sld [smem:[#allocation5]]
    %v297 = vstv %s296
    %v298 = vadd.f32 %v294, %v297
    %v299 = vadd.f32 %v295, %v297
    %302 = vst [vmem:[#allocation1] sm:$0xff] %v298
    %303 = vst [vmem:[#allocation1 + $0x9] sm:$0xff] %v299
    %s304 = scalar_lea.vmem [#allocation1], 4
    %v305 = vld [vmem:[%s304] ss:$9 sm:$0xff]
    %s307 = scalar_lea.vmem [#allocation2], 4
    %308 = vst.msk [vmem:[%s307] ss:$8 sm:$0x3] %vm97, %v305
    %309 = vst.msk [vmem:[%s307] ss:$8 sm:$0x0] %vm97, %v305
    %s310 = sld [smem:[#allocation3 + $0x1]]
    %v311 = vstv %s310
    %v312 = vmul.f32 %v42, %v311
    %v313 = vmul.f32 %v43, %v311
    %s314 = sld [smem:[#allocation3 + $0x5]]
    %v315 = vstv %s314
    %v316 = vmul.f32 %v42, %v315
    %v317 = vmul.f32 %v43, %v315
    %v320 = vrot.slane %v316, 1
    %v321 = vrot.slane %v317, 1
    %v324 = vadd.f32 %v312, %v320
    %v325 = vadd.f32 %v313, %v321
    %s326 = sld [smem:[#allocation3 + $0x9]]
    %v327 = vstv %s326
    %v328 = vmul.f32 %v42, %v327
    %v329 = vmul.f32 %v43, %v327
    %v332 = vrot.slane %v328, 2
    %v333 = vrot.slane %v329, 2
    %v336 = vadd.f32 %v324, %v332
    %v337 = vadd.f32 %v325, %v333
    %s338 = sld [smem:[#allocation3 + $0xd]]
    %v339 = vstv %s338
    %v340 = vmul.f32 %v42, %v339
    %v341 = vmul.f32 %v43, %v339
    %v344 = vrot.slane %v340, 3
    %v345 = vrot.slane %v341, 3
    %v348 = vadd.f32 %v336, %v344
    %v349 = vadd.f32 %v337, %v345
    %s350 = sld [smem:[#allocation5 + $0x1]]
    %v351 = vstv %s350
    %v352 = vadd.f32 %v348, %v351
    %v353 = vadd.f32 %v349, %v351
    %356 = vst [vmem:[#allocation1] sm:$0xff] %v352
    %357 = vst [vmem:[#allocation1 + $0x9] sm:$0xff] %v353
    %s358 = scalar_lea.vmem [#allocation1], 4
    %v359 = vld [vmem:[%s358] ss:$9 sm:$0xff]
    %s361 = scalar_lea.vmem [#allocation2], 5
    %362 = vst.msk [vmem:[%s361] ss:$8 sm:$0x3] %vm97, %v359
    %363 = vst.msk [vmem:[%s361] ss:$8 sm:$0x0] %vm97, %v359
    %s364 = sld [smem:[#allocation3 + $0x2]]
    %v365 = vstv %s364
    %v366 = vmul.f32 %v42, %v365
    %v367 = vmul.f32 %v43, %v365
    %s368 = sld [smem:[#allocation3 + $0x6]]
    %v369 = vstv %s368
    %v370 = vmul.f32 %v42, %v369
    %v371 = vmul.f32 %v43, %v369
    %v374 = vrot.slane %v370, 1
    %v375 = vrot.slane %v371, 1
    %v378 = vadd.f32 %v366, %v374
    %v379 = vadd.f32 %v367, %v375
    %s380 = sld [smem:[#allocation3 + $0xa]]
    %v381 = vstv %s380
    %v382 = vmul.f32 %v42, %v381
    %v383 = vmul.f32 %v43, %v381
    %v386 = vrot.slane %v382, 2
    %v387 = vrot.slane %v383, 2
    %v390 = vadd.f32 %v378, %v386
    %v391 = vadd.f32 %v379, %v387
    %s392 = sld [smem:[#allocation3 + $0xe]]
    %v393 = vstv %s392
    %v394 = vmul.f32 %v42, %v393
    %v395 = vmul.f32 %v43, %v393
    %v398 = vrot.slane %v394, 3
    %v399 = vrot.slane %v395, 3
    %v402 = vadd.f32 %v390, %v398
    %v403 = vadd.f32 %v391, %v399
    %s404 = sld [smem:[#allocation5 + $0x2]]
    %v405 = vstv %s404
    %v406 = vadd.f32 %v402, %v405
    %v407 = vadd.f32 %v403, %v405
    %410 = vst [vmem:[#allocation1] sm:$0xff] %v406
    %411 = vst [vmem:[#allocation1 + $0x9] sm:$0xff] %v407
    %s412 = scalar_lea.vmem [#allocation1], 4
    %v413 = vld [vmem:[%s412] ss:$9 sm:$0xff]
    %s415 = scalar_lea.vmem [#allocation2], 6
    %416 = vst.msk [vmem:[%s415] ss:$8 sm:$0x3] %vm97, %v413
    %417 = vst.msk [vmem:[%s415] ss:$8 sm:$0x0] %vm97, %v413
    %s418 = sld [smem:[#allocation3 + $0x3]]
    %v419 = vstv %s418
    %v420 = vmul.f32 %v42, %v419
    %v421 = vmul.f32 %v43, %v419
    %s422 = sld [smem:[#allocation3 + $0x7]]
    %v423 = vstv %s422
    %v424 = vmul.f32 %v42, %v423
    %v425 = vmul.f32 %v43, %v423
    %v428 = vrot.slane %v424, 1
    %v429 = vrot.slane %v425, 1
    %v432 = vadd.f32 %v420, %v428
    %v433 = vadd.f32 %v421, %v429
    %s434 = sld [smem:[#allocation3 + $0xb]]
    %v435 = vstv %s434
    %v436 = vmul.f32 %v42, %v435
    %v437 = vmul.f32 %v43, %v435
    %v440 = vrot.slane %v436, 2
    %v441 = vrot.slane %v437, 2
    %v444 = vadd.f32 %v432, %v440
    %v445 = vadd.f32 %v433, %v441
    %s446 = sld [smem:[#allocation3 + $0xf]]
    %v447 = vstv %s446
    %v448 = vmul.f32 %v42, %v447
    %v449 = vmul.f32 %v43, %v447
    %v452 = vrot.slane %v448, 3
    %v453 = vrot.slane %v449, 3
    %v456 = vadd.f32 %v444, %v452
    %v457 = vadd.f32 %v445, %v453
    %s458 = sld [smem:[#allocation5 + $0x3]]
    %v459 = vstv %s458
    %v460 = vadd.f32 %v456, %v459
    %v461 = vadd.f32 %v457, %v459
    %464 = vst [vmem:[#allocation1] sm:$0xff] %v460
    %465 = vst [vmem:[#allocation1 + $0x9] sm:$0xff] %v461
    %s466 = scalar_lea.vmem [#allocation1], 4
    %v467 = vld [vmem:[%s466] ss:$9 sm:$0xff]
    %s469 = scalar_lea.vmem [#allocation2], 7
    %470 = vst.msk [vmem:[%s469] ss:$8 sm:$0x3] %vm97, %v467
    %471 = vst.msk [vmem:[%s469] ss:$8 sm:$0x0] %vm97, %v467
    %v472 = vld [vmem:[%s3] sm:$0xff]
    %v473 = vld [vmem:[#allocation2] sm:$0xff]
    %v474 = vld [vmem:[#allocation2 + $0x8] sm:$0xff]
    %v475 = vtanh.pop %v473
    %v476 = vtanh.pop %v474
    %478 = vset.pattern.permute.xlu0 0
    %479 = vperm.xlu0 %478, %v472
    %v480 = vpop.permute.xlu0 %479
    %v482 = vmul.f32 %v475, %v480
    %v483 = vmul.f32 %v476, %v480
    %484 = vset.pattern.permute.xlu0 1
    %485 = vperm.xlu0 %484, %v472
    %v486 = vpop.permute.xlu0 %485
    %v488 = vadd.f32 %v482, %v486
    %v489 = vadd.f32 %v483, %v486
    %490 = vst [vmem:[%s4] sm:$0xff] %v488
    %491 = vst [vmem:[%s4 + $0x8] sm:$0xff] %v489
    // Predicated region
    $region26: #{cfg_denoiser_forward.1} parent=1 // pred_check
      _
    $region27: #{cfg_denoiser_forward.1} parent=1 // pred_check_branch
      %493 = sbr.rel (0) target = $region29
    $region28: #{cfg_denoiser_forward.1} parent=1 // pred_region
      _
    $region29: #{cfg_denoiser_forward.1} parent=1 // pred_fallthru
      _
    // Predicated region
    $region30: #{cfg_denoiser_forward.1} parent=1 // pred_check
      _
    $region31: #{cfg_denoiser_forward.1} parent=1 // pred_check_branch
      %495 = sbr.rel (0) target = $region33
    $region32: #{cfg_denoiser_forward.1} parent=1 // pred_region
      _
    $region33: #{cfg_denoiser_forward.1} parent=1 // pred_fallthru
      _
    %496 = vsyncpa [#allocation4], 1
    %497 = vsyncpa [#allocation6], 1

</llo_original>
